<compile_context>
chip_gen: v5e
topology: v5e:2x2
jax: 0.10.0
libtpu: 0.0.40
codegen_flags: <defaults>
</compile_context>

<pallas_src>
import jax
import jax.numpy as jnp
from jax.experimental import pallas as pl
from jax.experimental.pallas import tpu as pltpu

S = 1024                       # sequence length fixed by the module's embedding
D = 74                         # feature dim fixed by the module's embedding
LANES = 128                    # TPU lane width
FLAT_ROWS = (S * D) // LANES   # 592 (exact: 1024*74 == 592*128)
assert FLAT_ROWS * LANES == S * D

ROW_TILE = 296                 # divides 592 and is a multiple of 8 → (8,128) OK
N_ROW_TILES = FLAT_ROWS // ROW_TILE   # 2


def _tsa_add_kernel(x_ref, emb_ref, o_ref):
    # x_ref / o_ref: (1, ROW_TILE, 128) lane-dense tile for one (row-tile, batch) step
    # emb_ref:       (ROW_TILE, 128) shared embedding tile (reused across batch steps)
    o_ref[...] = x_ref[...] + emb_ref[...]


def tsa_helper_forward(x, embedding):
    """y = x + embedding, embedding broadcast over batch.

    x:         (B, 1024, 74) float32
    embedding: (1, 1024, 74) float32
    """
    B = x.shape[0]
    assert x.shape == (B, S, D)
    assert embedding.shape == (1, S, D)

    # Lane-dense views (pure logical reshape of contiguous trailing dims).
    x2 = x.reshape(B, FLAT_ROWS, LANES)
    emb2 = embedding.reshape(FLAT_ROWS, LANES)

    out2 = pl.pallas_call(
        _tsa_add_kernel,
        out_shape=jax.ShapeDtypeStruct((B, FLAT_ROWS, LANES), x.dtype),
        grid_spec=pltpu.PrefetchScalarGridSpec(
            num_scalar_prefetch=0,
            # Row-tile axis slow, batch axis fast: the embedding block index
            # only depends on the row tile, so the shared tile is not re-DMA'd
            # on every inner (batch) step.
            grid=(N_ROW_TILES, B),
            in_specs=[
                pl.BlockSpec((1, ROW_TILE, LANES), lambda r, b: (b, r, 0)),  # x
                pl.BlockSpec((ROW_TILE, LANES), lambda r, b: (r, 0)),        # embedding
            ],
            out_specs=pl.BlockSpec((1, ROW_TILE, LANES), lambda r, b: (b, r, 0)),
        ),
        compiler_params=pltpu.CompilerParams(
            dimension_semantics=("parallel", "parallel"),
        ),
    )(x2, emb2)

    # Free logical reshape back to the module's (B, 1024, 74) layout.
    return out2.reshape(B, S, D)


if __name__ == "__main__":
    key = jax.random.PRNGKey(0)
    kx, ke = jax.random.split(key)

    B = 2
    x = jax.random.normal(kx, (B, S, D), dtype=jnp.float32)

    # Module __init__ uses torch.zeros for the embedding; initialize non-zero
    # so the broadcast-add path is actually exercised.
    embedding = jax.random.normal(ke, (1, S, D), dtype=jnp.float32)

    y = tsa_helper_forward(x, embedding)
    y = jax.block_until_ready(y)

    # Reference check against plain JAX broadcast-add.
    y_ref = x + embedding
    assert y.shape == (B, S, D)
    assert y.dtype == jnp.float32
    assert jnp.allclose(y, y_ref, atol=1e-6, rtol=1e-6)

    print("KERNEL_OK")
</pallas_src>

<mosaic_0001>
module attributes {stable_mosaic.version = 11 : i64} {
  func.func @_tsa_add_kernel(%arg0: i32, %arg1: i32, %arg2: memref<1x296x128xf32, #tpu.memory_space<vmem>>, %arg3: memref<296x128xf32, #tpu.memory_space<vmem>>, %arg4: memref<1x296x128xf32, #tpu.memory_space<vmem>>) attributes {dimension_semantics = [#tpu.dimension_semantics<parallel>, #tpu.dimension_semantics<parallel>], iteration_bounds = array<i64: 2, 2>, scalar_prefetch = 0 : i64, scratch_operands = 0 : i64, tpu.core_type = #tpu.core_type<tc>, window_params = [{transform_indices = @transform_0, window_bounds = array<i64: 1, 296, 128>}, {transform_indices = @transform_1, window_bounds = array<i64: 296, 128>}, {transform_indices = @transform_2, window_bounds = array<i64: 1, 296, 128>}]} {
    %c0 = arith.constant 0 : index
    %c0_0 = arith.constant 0 : index
    %c0_1 = arith.constant 0 : index
    %0 = vector.load %arg2[%c0, %c0_0, %c0_1] : memref<1x296x128xf32, #tpu.memory_space<vmem>>, vector<1x296x128xf32>
    %c0_2 = arith.constant 0 : index
    %c0_3 = arith.constant 0 : index
    %1 = vector.load %arg3[%c0_2, %c0_3] : memref<296x128xf32, #tpu.memory_space<vmem>>, vector<296x128xf32>
    %2 = vector.shape_cast %1 : vector<296x128xf32> to vector<1x296x128xf32>
    %3 = arith.addf %0, %2 : vector<1x296x128xf32>
    %c0_4 = arith.constant 0 : index
    %c0_5 = arith.constant 0 : index
    %c0_6 = arith.constant 0 : index
    %4 = vector.load %arg4[%c0_4, %c0_5, %c0_6] : memref<1x296x128xf32, #tpu.memory_space<vmem>>, vector<1x296x128xf32>
    tpu.vector_store %arg4[%c0_4, %c0_5, %c0_6], %3 {strides = array<i32>} : memref<1x296x128xf32, #tpu.memory_space<vmem>>, vector<1x296x128xf32>,
    return
  }
  func.func @transform_0(%arg0: i32, %arg1: i32) -> (i32, i32, i32) {
    %c0_i32 = arith.constant 0 : i32
    %c0_i32_0 = arith.constant 0 : i32
    return %arg1, %arg0, %c0_i32 : i32, i32, i32
  }
  func.func @transform_1(%arg0: i32, %arg1: i32) -> (i32, i32) {
    %c0_i32 = arith.constant 0 : i32
    %c0_i32_0 = arith.constant 0 : i32
    return %arg0, %c0_i32 : i32, i32
  }
  func.func @transform_2(%arg0: i32, %arg1: i32) -> (i32, i32, i32) {
    %c0_i32 = arith.constant 0 : i32
    %c0_i32_0 = arith.constant 0 : i32
    return %arg1, %arg0, %c0_i32 : i32, i32, i32
  }
}

</mosaic_0001>

<llo_original>
// kernel: tpu_custom_call.1
$region0: #{tpu_custom_call.1}
  #allocation0 [shape = 'u32[]', space=smem, size = 0x4, offset = 0x4, fixed_abs, tag = 'smem constant byte address 0x4 - core index']
  #allocation1 [shape = 'u32[72,128]{1,0:T(1,128)}', space=vmem, size = 0x9000, scoped, tag = 'internal scratch']
  %s0 = inlined_call_operand.hbm [shape: f32[2,592,128], index: 0, kind: input, shape index: {}]
  %s1 = inlined_call_operand.hbm [shape: f32[592,128], index: 1, kind: input, shape index: {}]
  %s2 = inlined_call_operand.hbm [shape: f32[2,592,128], index: 2, kind: output, shape index: {}]
  %s3 = sld [smem:[#allocation0]]
  $region49: #{tpu_custom_call.1} parent=0
    _
  %s5 = ssub.s32 1, %s3
  %s6 = scalar_select 0, %s5, %s3
  $region1: #{tpu_custom_call.1} parent=0
    #allocation2 [shape = 'u8[303104]{0}', space=vmem, size = 0x4a000, scoped, tag = 'input window, operand 0']
    #allocation3 [shape = 's32[2]{0}', space=sflag, size = 0x8, scoped, tag = 'scoped memory for tpu_custom_call.1']
    #allocation4 [shape = 's32[2]{0}', space=sflag, size = 0x8, scoped, tag = 'scoped memory for tpu_custom_call.1']
    #allocation5 [shape = 'u8[303104]{0}', space=vmem, size = 0x4a000, scoped, tag = 'input window, operand 1']
    #allocation6 [shape = 's32[2]{0}', space=sflag, size = 0x8, scoped, tag = 'scoped memory for tpu_custom_call.1']
    #allocation7 [shape = 'u8[303104]{0}', space=vmem, size = 0x4a000, scoped, tag = 'output window, operand 0']
    %7 = vsyncpa [#allocation3], 0
    %s8 = scalar_lea.sflag [#allocation3], 1
    %9 = vsyncpa %s8, 0
    %10 = vsyncpa [#allocation6], 0
    %s11 = scalar_lea.sflag [#allocation6], 1
    %12 = vsyncpa %s11, 0
    %13 = vsyncpa [#allocation4], 0
    %s14 = scalar_lea.sflag [#allocation4], 1
    %15 = vsyncpa %s14, 0
    loop: start=0, step=1, limit=6
    $region2: #{tpu_custom_call.1} parent=1 // loop_pre_header
      _
    $region3: #{tpu_custom_call.1} parent=1 // loop_header
      %s17 = sphi 0, %s21
      %p18 = scmp.ge.s32.totalorder %s17, 6
      %s24 = sphi 0, %s36
      %s25 = sphi 0, %s32
      %s26 = sphi 0, %s24
      %s27 = sphi 0, %s25
      %s28 = sphi 0, %s26
      %s29 = sphi 0, %s27
      %s41 = sphi 0, %s43
      %s44 = sphi 0, %s41
      %s45 = sphi 0, %s44
      %s61 = sphi 0, %s45
      %s67 = sphi 0, %s69
      %s70 = sphi 0, %s67
      %s71 = sphi 0, %s70
      %s87 = sphi 0, %s71
      %s95 = sphi 0, %s97
      %s98 = sphi 0, %s95
      %s99 = sphi 0, %s98
      %s115 = sphi 0, %s99
    $region4: #{tpu_custom_call.1} parent=1 // loop_header_branch
      %20 = sbr.rel (%p18) target = $region8
    $region5: #{tpu_custom_call.1} parent=1 // loop_body
      %s22 = ssub.s32 %s17, 1
      %s23 = ssub.s32 %s17, 2
      %s30 = sadd.s32 1, %s25
      %p31 = scmp.ge.s32.totalorder %s30, 2
      %s32 = scalar_select %p31, 0, %s30
      %s33 = sadd.s32 1, %s24
      %s34 = scalar_select %p31, %s33, %s24
      %p35 = scmp.ge.s32.totalorder %s34, 2
      %s36 = scalar_select %p35, 0, %s34
      %s37 = ssub.s32 %s25, %s32
      %s38 = ssub.s32 %s24, %s36
      %s39 = sor.u32 %s37, %s38
      %p40 = scmp.eq.s32.totalorder %s39, 0
      %s42 = sadd.s32 %s41, 1
      %s43 = scalar_select %p40, %s41, %s42
      %p46 = pneg %p40
      %p47 = scmp.eq.s32.totalorder %s17, 3
      %p48 = por %p46, %p47
      %p49 = scmp.ne.s32.totalorder %s41, %s44
      %p50 = scmp.eq.s32.totalorder %s17, 0
      %p51 = por %p49, %p50
      %p52 = scmp.ne.s32.totalorder %s41, %s44
      %p53 = scmp.eq.s32.totalorder %s22, 3
      %p54 = por %p52, %p53
      %p55 = scmp.ne.s32.totalorder %s44, %s45
      %p56 = scmp.eq.s32.totalorder %s22, 0
      %p57 = por %p55, %p56
      %p58 = scmp.ne.s32.totalorder %s44, %s45
      %p59 = scmp.eq.s32.totalorder %s23, 3
      %p60 = por %p58, %p59
      %p62 = scmp.ne.s32.totalorder %s45, %s61
      %p63 = scmp.eq.s32.totalorder %s23, 0
      %p64 = por %p62, %p63
      %s65 = ssub.s32 %s24, %s36
      %p66 = scmp.eq.s32.totalorder %s65, 0
      %s68 = sadd.s32 %s67, 1
      %s69 = scalar_select %p66, %s67, %s68
      %p72 = pneg %p66
      %p73 = scmp.eq.s32.totalorder %s17, 3
      %p74 = por %p72, %p73
      %p75 = scmp.ne.s32.totalorder %s67, %s70
      %p76 = scmp.eq.s32.totalorder %s17, 0
      %p77 = por %p75, %p76
      %p78 = scmp.ne.s32.totalorder %s67, %s70
      %p79 = scmp.eq.s32.totalorder %s22, 3
      %p80 = por %p78, %p79
      %p81 = scmp.ne.s32.totalorder %s70, %s71
      %p82 = scmp.eq.s32.totalorder %s22, 0
      %p83 = por %p81, %p82
      %p84 = scmp.ne.s32.totalorder %s70, %s71
      %p85 = scmp.eq.s32.totalorder %s23, 3
      %p86 = por %p84, %p85
      %p88 = scmp.ne.s32.totalorder %s71, %s87
      %p89 = scmp.eq.s32.totalorder %s23, 0
      %p90 = por %p88, %p89
      %s91 = ssub.s32 %s25, %s32
      %s92 = ssub.s32 %s24, %s36
      %s93 = sor.u32 %s91, %s92
      %p94 = scmp.eq.s32.totalorder %s93, 0
      %s96 = sadd.s32 %s95, 1
      %s97 = scalar_select %p94, %s95, %s96
      %p100 = pneg %p94
      %p101 = scmp.eq.s32.totalorder %s17, 3
      %p102 = por %p100, %p101
      %p103 = scmp.ne.s32.totalorder %s95, %s98
      %p104 = scmp.eq.s32.totalorder %s17, 0
      %p105 = por %p103, %p104
      %p106 = scmp.ne.s32.totalorder %s95, %s98
      %p107 = scmp.eq.s32.totalorder %s22, 3
      %p108 = por %p106, %p107
      %p109 = scmp.ne.s32.totalorder %s98, %s99
      %p110 = scmp.eq.s32.totalorder %s22, 0
      %p111 = por %p109, %p110
      %p112 = scmp.ne.s32.totalorder %s98, %s99
      %p113 = scmp.eq.s32.totalorder %s23, 3
      %p114 = por %p112, %p113
      %p116 = scmp.ne.s32.totalorder %s99, %s115
      %p117 = scmp.eq.s32.totalorder %s23, 0
      %p118 = por %p116, %p117
      %p119 = scmp.le.s32.totalorder 1, %s17
      %p120 = scmp.lt.s32.totalorder %s17, 5
      %p121 = pnand %p119, %p120
      %p122 = pneg %p121
      // Predicated region
      $region9: #{tpu_custom_call.1} parent=5 // pred_check
        _
      $region10: #{tpu_custom_call.1} parent=5 // pred_check_branch
        %124 = sbr.rel (%p121) target = $region12
      $region11: #{tpu_custom_call.1} parent=5 // pred_region
        %s125 = ssub.s32 %s17, 1
      $region12: #{tpu_custom_call.1} parent=5 // pred_fallthru
        _
      %p126 = scmp.lt.s32.totalorder %s17, 4
      // Predicated region
      $region13: #{tpu_custom_call.1} parent=5 // pred_check
        %p127 = pneg %p126
      $region14: #{tpu_custom_call.1} parent=5 // pred_check_branch
        %129 = sbr.rel (%p127) target = $region16
      $region15: #{tpu_custom_call.1} parent=5 // pred_region
        // Predicated region
        $region17: #{tpu_custom_call.1} parent=15 // pred_check
          %p130 = pneg %p51
        $region18: #{tpu_custom_call.1} parent=15 // pred_check_branch
          %132 = sbr.rel (%p130) target = $region20
        $region19: #{tpu_custom_call.1} parent=15 // pred_region
          %s133 = sand.u32 %s41, 1
          %s134 = scalar_lea.sflag [#allocation3], %s133
          %s135 = sand.u32 %s41, 1
          %s136 = smul.addr %s135, 296
          %s137 = scalar_lea.vmem [#allocation2], %s136
          %s138 = smul.u32 37, %s24
          %140 = vsyncadd %s134, 0
          %s141 = smul.addr %s25, 74
          %s142 = sadd.s32 %s138, %s141
          %s143 = smul.addr %s142, 8
          %s144 = scalar_lea.hbm %s0, %s143
          %s145 = sshll.u32 %s144, 4
          %s146 = int_to_ptr.hbm [resolvable:$true] %s145
          %s147 = sshll.u32 %s137, 4
          %s148 = int_to_ptr.vmem [resolvable:$true] %s147
          %153 = dma.hbm_to_vmem [thread:$0]  %s146, 4736, %s148, %s134, 128, 128, 8
        $region20: #{tpu_custom_call.1} parent=15 // pred_fallthru
          _
        // Predicated region
        $region21: #{tpu_custom_call.1} parent=15 // pred_check
          %p154 = pneg %p77
        $region22: #{tpu_custom_call.1} parent=15 // pred_check_branch
          %156 = sbr.rel (%p154) target = $region24
        $region23: #{tpu_custom_call.1} parent=15 // pred_region
          %s157 = sand.u32 %s67, 1
          %s158 = scalar_lea.sflag [#allocation6], %s157
          %s159 = sand.u32 %s67, 1
          %s160 = smul.addr %s159, 296
          %s161 = scalar_lea.vmem [#allocation5], %s160
          %s162 = smul.u32 37, %s24
          %164 = vsyncadd %s158, 0
          %s165 = smul.addr %s162, 8
          %s166 = scalar_lea.hbm %s1, %s165
          %s167 = sshll.u32 %s166, 4
          %s168 = int_to_ptr.hbm [resolvable:$true] %s167
          %s169 = sshll.u32 %s161, 4
          %s170 = int_to_ptr.vmem [resolvable:$true] %s169
          %175 = dma.hbm_to_vmem [thread:$0]  %s168, 4736, %s170, %s158, 128, 128, 8
        $region24: #{tpu_custom_call.1} parent=15 // pred_fallthru
          _
      $region16: #{tpu_custom_call.1} parent=5 // pred_fallthru
        _
      %p176 = scmp.le.s32.totalorder 1, %s17
      %p177 = scmp.lt.s32.totalorder %s17, 5
      %p178 = pnand %p176, %p177
      %p179 = pneg %p178
      // Predicated region
      $region25: #{tpu_custom_call.1} parent=5 // pred_check
        _
      $region26: #{tpu_custom_call.1} parent=5 // pred_check_branch
        %181 = sbr.rel (%p178) target = $region28
      $region27: #{tpu_custom_call.1} parent=5 // pred_region
        %s182 = ssub.s32 %s17, 1
        %s183 = sand.u32 %s44, 1
        %s184 = scalar_lea.sflag [#allocation3], %s183
        %s185 = sand.u32 %s44, 1
        %s186 = smul.addr %s185, 296
        %s187 = scalar_lea.vmem [#allocation2], %s186
        // Predicated region
        $region29: #{tpu_custom_call.1} parent=27 // pred_check
          %p188 = pneg %p57
        $region30: #{tpu_custom_call.1} parent=27 // pred_check_branch
          %190 = sbr.rel (%p188) target = $region32
        $region31: #{tpu_custom_call.1} parent=27 // pred_region
          %192 = dma.done %s184, 4736
        $region32: #{tpu_custom_call.1} parent=27 // pred_fallthru
          _
        %s193 = sand.u32 %s70, 1
        %s194 = scalar_lea.sflag [#allocation6], %s193
        %s195 = sand.u32 %s70, 1
        %s196 = smul.addr %s195, 296
        %s197 = scalar_lea.vmem [#allocation5], %s196
        // Predicated region
        $region33: #{tpu_custom_call.1} parent=27 // pred_check
          %p198 = pneg %p83
        $region34: #{tpu_custom_call.1} parent=27 // pred_check_branch
          %200 = sbr.rel (%p198) target = $region36
        $region35: #{tpu_custom_call.1} parent=27 // pred_region
          %202 = dma.done %s194, 4736
        $region36: #{tpu_custom_call.1} parent=27 // pred_fallthru
          _
        %s203 = sand.u32 %s44, 1
        %s204 = scalar_lea.sflag [#allocation3], %s203
        %s205 = sand.u32 %s44, 1
        %s206 = smul.addr %s205, 296
        %s207 = scalar_lea.vmem [#allocation2], %s206
        %p208 = pneg %p57
        %p209 = pneg %p54
        %s210 = sand.u32 %s70, 1
        %s211 = scalar_lea.sflag [#allocation6], %s210
        %s212 = sand.u32 %s70, 1
        %s213 = smul.addr %s212, 296
        %s214 = scalar_lea.vmem [#allocation5], %s213
        %p215 = pneg %p83
        %p216 = pneg %p80
        %p217 = pneg %p111
        %p218 = pneg %p108
        %s219 = sand.u32 %s98, 1
        %s220 = scalar_lea.sflag [#allocation4], %s219
        %s221 = sand.u32 %s98, 1
        %s222 = smul.addr %s221, 296
        %s223 = scalar_lea.vmem [#allocation7], %s222
        %s224 = smul.u32 37, %s26
        %s225 = smul.u32 37, %s26
        %s226 = smul.u32 37, %s26
        %v227 = vld [vmem:[%s187] sm:$0xff]
        %v228 = vld [vmem:[%s187 + $0x8] sm:$0xff]
        %v229 = vld [vmem:[%s187 + $0x10] sm:$0xff]
        %v230 = vld [vmem:[%s187 + $0x18] sm:$0xff]
        %v231 = vld [vmem:[%s187 + $0x20] sm:$0xff]
        %v232 = vld [vmem:[%s187 + $0x28] sm:$0xff]
        %v233 = vld [vmem:[%s187 + $0x30] sm:$0xff]
        %v234 = vld [vmem:[%s187 + $0x38] sm:$0xff]
        %v235 = vld [vmem:[%s187 + $0x40] sm:$0xff]
        %v236 = vld [vmem:[%s187 + $0x48] sm:$0xff]
        %v237 = vld [vmem:[%s187 + $0x50] sm:$0xff]
        %v238 = vld [vmem:[%s187 + $0x58] sm:$0xff]
        %v239 = vld [vmem:[%s187 + $0x60] sm:$0xff]
        %v240 = vld [vmem:[%s187 + $0x68] sm:$0xff]
        %v241 = vld [vmem:[%s187 + $0x70] sm:$0xff]
        %v242 = vld [vmem:[%s187 + $0x78] sm:$0xff]
        %v243 = vld [vmem:[%s187 + $0x80] sm:$0xff]
        %v244 = vld [vmem:[%s187 + $0x88] sm:$0xff]
        %v245 = vld [vmem:[%s187 + $0x90] sm:$0xff]
        %v246 = vld [vmem:[%s187 + $0x98] sm:$0xff]
        %v247 = vld [vmem:[%s187 + $0xa0] sm:$0xff]
        %v248 = vld [vmem:[%s187 + $0xa8] sm:$0xff]
        %v249 = vld [vmem:[%s187 + $0xb0] sm:$0xff]
        %v250 = vld [vmem:[%s187 + $0xb8] sm:$0xff]
        %v251 = vld [vmem:[%s187 + $0xc0] sm:$0xff]
        %v252 = vld [vmem:[%s187 + $0xc8] sm:$0xff]
        %v253 = vld [vmem:[%s187 + $0xd0] sm:$0xff]
        %v254 = vld [vmem:[%s187 + $0xd8] sm:$0xff]
        %v255 = vld [vmem:[%s187 + $0xe0] sm:$0xff]
        %v256 = vld [vmem:[%s187 + $0xe8] sm:$0xff]
        %v257 = vld [vmem:[%s187 + $0xf0] sm:$0xff]
        %v258 = vld [vmem:[%s187 + $0xf8] sm:$0xff]
        %v259 = vld [vmem:[%s187 + $0x100] sm:$0xff]
        %v260 = vld [vmem:[%s187 + $0x108] sm:$0xff]
        %v261 = vld [vmem:[%s187 + $0x110] sm:$0xff]
        %v262 = vld [vmem:[%s187 + $0x118] sm:$0xff]
        %v263 = vld [vmem:[%s187 + $0x120] sm:$0xff]
        %v264 = vld [vmem:[%s197] sm:$0xff]
        %v265 = vld [vmem:[%s197 + $0x8] sm:$0xff]
        %v266 = vld [vmem:[%s197 + $0x10] sm:$0xff]
        %v267 = vld [vmem:[%s197 + $0x18] sm:$0xff]
        %v268 = vld [vmem:[%s197 + $0x20] sm:$0xff]
        %v269 = vld [vmem:[%s197 + $0x28] sm:$0xff]
        %v270 = vld [vmem:[%s197 + $0x30] sm:$0xff]
        %v271 = vld [vmem:[%s197 + $0x38] sm:$0xff]
        %v272 = vld [vmem:[%s197 + $0x40] sm:$0xff]
        %v273 = vld [vmem:[%s197 + $0x48] sm:$0xff]
        %v274 = vld [vmem:[%s197 + $0x50] sm:$0xff]
        %v275 = vld [vmem:[%s197 + $0x58] sm:$0xff]
        %v276 = vld [vmem:[%s197 + $0x60] sm:$0xff]
        %v277 = vld [vmem:[%s197 + $0x68] sm:$0xff]
        %v278 = vld [vmem:[%s197 + $0x70] sm:$0xff]
        %v279 = vld [vmem:[%s197 + $0x78] sm:$0xff]
        %v280 = vld [vmem:[%s197 + $0x80] sm:$0xff]
        %v281 = vld [vmem:[%s197 + $0x88] sm:$0xff]
        %v282 = vld [vmem:[%s197 + $0x90] sm:$0xff]
        %v283 = vld [vmem:[%s197 + $0x98] sm:$0xff]
        %v284 = vld [vmem:[%s197 + $0xa0] sm:$0xff]
        %v285 = vld [vmem:[%s197 + $0xa8] sm:$0xff]
        %v286 = vld [vmem:[%s197 + $0xb0] sm:$0xff]
        %v287 = vld [vmem:[%s197 + $0xb8] sm:$0xff]
        %v288 = vld [vmem:[%s197 + $0xc0] sm:$0xff]
        %v289 = vld [vmem:[%s197 + $0xc8] sm:$0xff]
        %v290 = vld [vmem:[%s197 + $0xd0] sm:$0xff]
        %v291 = vld [vmem:[%s197 + $0xd8] sm:$0xff]
        %v292 = vld [vmem:[%s197 + $0xe0] sm:$0xff]
        %v293 = vld [vmem:[%s197 + $0xe8] sm:$0xff]
        %v294 = vld [vmem:[%s197 + $0xf0] sm:$0xff]
        %v295 = vld [vmem:[%s197 + $0xf8] sm:$0xff]
        %v296 = vld [vmem:[%s197 + $0x100] sm:$0xff]
        %v297 = vld [vmem:[%s197 + $0x108] sm:$0xff]
        %v298 = vld [vmem:[%s197 + $0x110] sm:$0xff]
        %v299 = vld [vmem:[%s197 + $0x118] sm:$0xff]
        %v300 = vld [vmem:[%s197 + $0x120] sm:$0xff]
        %v301 = vadd.f32 %v227, %v264
        %v302 = vadd.f32 %v228, %v265
        %v303 = vadd.f32 %v229, %v266
        %v304 = vadd.f32 %v230, %v267
        %v305 = vadd.f32 %v231, %v268
        %v306 = vadd.f32 %v232, %v269
        %v307 = vadd.f32 %v233, %v270
        %v308 = vadd.f32 %v234, %v271
        %v309 = vadd.f32 %v235, %v272
        %v310 = vadd.f32 %v236, %v273
        %v311 = vadd.f32 %v237, %v274
        %v312 = vadd.f32 %v238, %v275
        %v313 = vadd.f32 %v239, %v276
        %v314 = vadd.f32 %v240, %v277
        %v315 = vadd.f32 %v241, %v278
        %v316 = vadd.f32 %v242, %v279
        %v317 = vadd.f32 %v243, %v280
        %v318 = vadd.f32 %v244, %v281
        %v319 = vadd.f32 %v245, %v282
        %v320 = vadd.f32 %v246, %v283
        %v321 = vadd.f32 %v247, %v284
        %v322 = vadd.f32 %v248, %v285
        %v323 = vadd.f32 %v249, %v286
        %v324 = vadd.f32 %v250, %v287
        %v325 = vadd.f32 %v251, %v288
        %v326 = vadd.f32 %v252, %v289
        %v327 = vadd.f32 %v253, %v290
        %v328 = vadd.f32 %v254, %v291
        %v329 = vadd.f32 %v255, %v292
        %v330 = vadd.f32 %v256, %v293
        %v331 = vadd.f32 %v257, %v294
        %v332 = vadd.f32 %v258, %v295
        %v333 = vadd.f32 %v259, %v296
        %v334 = vadd.f32 %v260, %v297
        %v335 = vadd.f32 %v261, %v298
        %v336 = vadd.f32 %v262, %v299
        %v337 = vadd.f32 %v263, %v300
        %338 = vst [vmem:[%s223] sm:$0xff] %v301
        %339 = vst [vmem:[%s223 + $0x8] sm:$0xff] %v302
        %340 = vst [vmem:[%s223 + $0x10] sm:$0xff] %v303
        %341 = vst [vmem:[%s223 + $0x18] sm:$0xff] %v304
        %342 = vst [vmem:[%s223 + $0x20] sm:$0xff] %v305
        %343 = vst [vmem:[%s223 + $0x28] sm:$0xff] %v306
        %344 = vst [vmem:[%s223 + $0x30] sm:$0xff] %v307
        %345 = vst [vmem:[%s223 + $0x38] sm:$0xff] %v308
        %346 = vst [vmem:[%s223 + $0x40] sm:$0xff] %v309
        %347 = vst [vmem:[%s223 + $0x48] sm:$0xff] %v310
        %348 = vst [vmem:[%s223 + $0x50] sm:$0xff] %v311
        %349 = vst [vmem:[%s223 + $0x58] sm:$0xff] %v312
        %350 = vst [vmem:[%s223 + $0x60] sm:$0xff] %v313
        %351 = vst [vmem:[%s223 + $0x68] sm:$0xff] %v314
        %352 = vst [vmem:[%s223 + $0x70] sm:$0xff] %v315
        %353 = vst [vmem:[%s223 + $0x78] sm:$0xff] %v316
        %354 = vst [vmem:[%s223 + $0x80] sm:$0xff] %v317
        %355 = vst [vmem:[%s223 + $0x88] sm:$0xff] %v318
        %356 = vst [vmem:[%s223 + $0x90] sm:$0xff] %v319
        %357 = vst [vmem:[%s223 + $0x98] sm:$0xff] %v320
        %358 = vst [vmem:[%s223 + $0xa0] sm:$0xff] %v321
        %359 = vst [vmem:[%s223 + $0xa8] sm:$0xff] %v322
        %360 = vst [vmem:[%s223 + $0xb0] sm:$0xff] %v323
        %361 = vst [vmem:[%s223 + $0xb8] sm:$0xff] %v324
        %362 = vst [vmem:[%s223 + $0xc0] sm:$0xff] %v325
        %363 = vst [vmem:[%s223 + $0xc8] sm:$0xff] %v326
        %364 = vst [vmem:[%s223 + $0xd0] sm:$0xff] %v327
        %365 = vst [vmem:[%s223 + $0xd8] sm:$0xff] %v328
        %366 = vst [vmem:[%s223 + $0xe0] sm:$0xff] %v329
        %367 = vst [vmem:[%s223 + $0xe8] sm:$0xff] %v330
        %368 = vst [vmem:[%s223 + $0xf0] sm:$0xff] %v331
        %369 = vst [vmem:[%s223 + $0xf8] sm:$0xff] %v332
        %370 = vst [vmem:[%s223 + $0x100] sm:$0xff] %v333
        %371 = vst [vmem:[%s223 + $0x108] sm:$0xff] %v334
        %372 = vst [vmem:[%s223 + $0x110] sm:$0xff] %v335
        %373 = vst [vmem:[%s223 + $0x118] sm:$0xff] %v336
        %374 = vst [vmem:[%s223 + $0x120] sm:$0xff] %v337
        %s375 = sand.u32 %s98, 1
        %s376 = scalar_lea.sflag [#allocation4], %s375
        %s377 = sand.u32 %s98, 1
        %s378 = smul.addr %s377, 296
        %s379 = scalar_lea.vmem [#allocation7], %s378
        // Predicated region
        $region37: #{tpu_custom_call.1} parent=27 // pred_check
          %p380 = pneg %p108
        $region38: #{tpu_custom_call.1} parent=27 // pred_check_branch
          %382 = sbr.rel (%p380) target = $region40
        $region39: #{tpu_custom_call.1} parent=27 // pred_region
          %s383 = smul.u32 37, %s26
          %385 = vsyncadd %s376, 0
          %s386 = smul.addr %s27, 74
          %s387 = sadd.s32 %s383, %s386
          %s388 = smul.addr %s387, 8
          %s389 = scalar_lea.hbm %s2, %s388
          %s390 = sshll.u32 %s379, 4
          %s391 = int_to_ptr.vmem [resolvable:$true] %s390
          %s392 = sshll.u32 %s389, 4
          %s393 = int_to_ptr.hbm [resolvable:$true] %s392
          %398 = dma.vmem_to_hbm [thread:$0]  %s391, 4736, %s393, %s376, 128, 128, 8
        $region40: #{tpu_custom_call.1} parent=27 // pred_fallthru
          _
      $region28: #{tpu_custom_call.1} parent=5 // pred_fallthru
        _
      %p399 = scmp.le.s32.totalorder 2, %s17
      // Predicated region
      $region41: #{tpu_custom_call.1} parent=5 // pred_check
        %p400 = pneg %p399
      $region42: #{tpu_custom_call.1} parent=5 // pred_check_branch
        %402 = sbr.rel (%p400) target = $region44
      $region43: #{tpu_custom_call.1} parent=5 // pred_region
        %s403 = ssub.s32 %s17, 2
        // Predicated region
        $region45: #{tpu_custom_call.1} parent=43 // pred_check
          %p404 = pneg %p114
        $region46: #{tpu_custom_call.1} parent=43 // pred_check_branch
          %406 = sbr.rel (%p404) target = $region48
        $region47: #{tpu_custom_call.1} parent=43 // pred_region
          %s407 = sand.u32 %s99, 1
          %s408 = scalar_lea.sflag [#allocation4], %s407
          %s409 = sand.u32 %s99, 1
          %s410 = smul.addr %s409, 296
          %s411 = scalar_lea.vmem [#allocation7], %s410
          %413 = dma.done %s408, 4736
        $region48: #{tpu_custom_call.1} parent=43 // pred_fallthru
          _
      $region44: #{tpu_custom_call.1} parent=5 // pred_fallthru
        _
    $region6: #{tpu_custom_call.1} parent=1 // loop_footer
      %s21 = sadd.s32 1, %s17
    $region7: #{tpu_custom_call.1} parent=1 // loop_footer_branch
      %16 = sbr.rel target = $region3
    $region8: #{tpu_custom_call.1} parent=1 // loop_exit
      _
    %414 = vsyncpa [#allocation3], 1
    %s415 = scalar_lea.sflag [#allocation3], 1
    %416 = vsyncpa %s415, 1
    %417 = vsyncpa [#allocation6], 1
    %s418 = scalar_lea.sflag [#allocation6], 1
    %419 = vsyncpa %s418, 1
    %420 = vsyncpa [#allocation4], 1
    %s421 = scalar_lea.sflag [#allocation4], 1
    %422 = vsyncpa %s421, 1

</llo_original>
